<compile_context>
chip_gen: v7x
topology: tpu7x:2x2x1
jax: 0.10.0
libtpu: 0.0.40
codegen_flags: <defaults>
</compile_context>

<pallas_src>
import jax
import jax.numpy as jnp
from jax.experimental import pallas as pl
from jax.experimental.pallas import tpu as pltpu


_TARGET_TILE_BYTES = 4 * 1024 * 1024   # per x tile; safe since vmem_limit is explicit
_MIN_SPLIT_BYTES = 4 * 1024 * 1024     # force >= 2 grid steps above this total size
_MIN_VMEM_LIMIT = 16 * 1024 * 1024
_MAX_VMEM_LIMIT = 60 * 1024 * 1024     # stays under v7x's 64 MiB physical VMEM


def _add_pe_kernel(x_ref, pe_ref, o_ref):
    # (TB, TC) x tile + (1, TC) pe tile.  One sublane-broadcast + one vadd per
    # vreg -- fully hidden under the HBM DMA, so nothing to optimize here.
    o_ref[...] = x_ref[...] + pe_ref[...]


def make_positional_encoding(dim: int, max_len: int = 512) -> jnp.ndarray:
    """Deterministic sinusoidal table, identical to the PyTorch __init__."""
    assert dim % 2 == 0, "sinusoidal PE requires an even dim (same as the PyTorch module)"
    position = jnp.arange(0, max_len, dtype=jnp.float32)[:, None]            # (max_len, 1)
    scaling_term = jnp.exp(
        jnp.arange(0, dim, 2, dtype=jnp.float32) * (-jnp.log(10000.0) / dim)
    )                                                                        # (dim//2,)
    pe = jnp.zeros((max_len, dim), dtype=jnp.float32)
    pe = pe.at[:, 0::2].set(jnp.sin(position * scaling_term))
    pe = pe.at[:, 1::2].set(jnp.cos(position * scaling_term))
    return pe[None, :, :]                                                    # (1, max_len, dim)


def _candidate_tiles(total: int, step: int):
    """Divisor tiles of `total` that are multiples of `step` (ascending).

    Falls back to [total] when no such divisor exists (full-extent blocks are
    always legal regardless of the (8, 128) rule).
    """
    if total % step != 0:
        return [total]
    return [d for d in range(step, total + 1, step) if total % d == 0]


def _pick_tiles(B: int, n: int, dtype_bytes: int, target_bytes: int):
    """Pick (tb, tc) jointly so tb*tc*dtype_bytes <= target_bytes whenever a
    legal tiling allows it; otherwise return the smallest legal tile (the
    explicit vmem_limit is then sized to that footprint)."""
    max_elems = max(1, target_bytes // dtype_bytes)
    col_cands = _candidate_tiles(n, 128)   # lane (last) dim candidates
    row_cands = _candidate_tiles(B, 8)     # sublane (second-to-last) dim candidates

    best_key, best = None, None
    for tc in col_cands:
        for tb in row_cands:
            if tc * tb <= max_elems:
                key = (tc * tb, tc)        # biggest tile first, tie-break lane-dense
                if best_key is None or key > best_key:
                    best_key, best = key, (tb, tc)
    if best is None:
        return row_cands[0], col_cands[0]
    return best


def _ensure_two_grid_steps(B: int, n: int, tb: int, tc: int, dtype_bytes: int):
    """v7x has two TensorCores; avoid a (1, 1) grid on non-trivial data."""
    if pl.cdiv(n, tc) * pl.cdiv(B, tb) >= 2:
        return tb, tc
    if B * n * dtype_bytes < _MIN_SPLIT_BYTES:
        return tb, tc
    smaller_cols = [c for c in _candidate_tiles(n, 128) if c < tc]
    if smaller_cols:
        return tb, smaller_cols[-1]
    smaller_rows = [r for r in _candidate_tiles(B, 8) if r < tb]
    if smaller_rows:
        return smaller_rows[-1], tc
    return tb, tc


def positional_encoding_forward(x: jnp.ndarray, pe: jnp.ndarray, *, donate_x: bool = False):
    """x: (B, S, D), pe: (1, max_len, D) with S <= max_len. Returns x + pe[:, :S].

    Set donate_x=True only when the caller no longer needs x (aliases the
    input buffer to the output, avoiding an extra HBM allocation).
    """
    B, S, D = x.shape
    assert pe.shape[0] == 1 and pe.shape[2] == D and S <= pe.shape[1]

    dtype_bytes = jnp.dtype(x.dtype).itemsize

    # Slice to the rows actually used and match x's dtype once, outside the kernel.
    pe_s = pe[0, :S, :].astype(x.dtype)                                      # (S, D)

    # Flatten so the last (lane) dim is S*D -> lane-dense loads/stores.
    n = S * D
    x2 = x.reshape(B, n)
    pe2 = pe_s.reshape(1, n)

    tb, tc = _pick_tiles(B, n, dtype_bytes, _TARGET_TILE_BYTES)
    tb, tc = _ensure_two_grid_steps(B, n, tb, tc, dtype_bytes)

    # Column axis OUTER so the pe block index is constant across inner row steps.
    grid = (pl.cdiv(n, tc), pl.cdiv(B, tb))

    # Explicit scoped-VMEM budget: double-buffered x-in + out + pe, +25% headroom.
    x_tile_bytes = tb * tc * dtype_bytes
    pe_tile_bytes = tc * dtype_bytes
    vmem_limit = int((4 * x_tile_bytes + 2 * pe_tile_bytes) * 1.25)
    try:
        max_limit = int(pltpu.get_tpu_info().vmem_capacity_bytes * 0.9)
    except Exception:
        max_limit = _MAX_VMEM_LIMIT
    vmem_limit = max(_MIN_VMEM_LIMIT, min(vmem_limit, max_limit))

    cost = pl.CostEstimate(
        flops=B * n,
        transcendentals=0,
        bytes_accessed=2 * B * n * dtype_bytes + n * dtype_bytes,
    )

    out2 = pl.pallas_call(
        _add_pe_kernel,
        out_shape=jax.ShapeDtypeStruct((B, n), x.dtype),
        grid_spec=pl.GridSpec(
            grid=grid,
            in_specs=[
                pl.BlockSpec((tb, tc), lambda c, b: (b, c)),   # x tile
                pl.BlockSpec((1, tc), lambda c, b: (0, c)),    # pe tile (b-invariant)
            ],
            out_specs=pl.BlockSpec((tb, tc), lambda c, b: (b, c)),
        ),
        compiler_params=pltpu.CompilerParams(
            dimension_semantics=("parallel", "parallel"),
            vmem_limit_bytes=vmem_limit,
        ),
        cost_estimate=cost,
        input_output_aliases=({0: 0} if donate_x else {}),
    )(x2, pe2)

    return out2.reshape(B, S, D)


if __name__ == "__main__":
    B, S, D = 2, 8, 32
    MAX_LEN = 512

    key = jax.random.PRNGKey(0)
    x = jax.random.normal(key, (B, S, D), dtype=jnp.float32)

    pe = make_positional_encoding(D, MAX_LEN)

    out = jax.block_until_ready(positional_encoding_forward(x, pe))

    # sanity check against plain-JAX reference
    ref = x + pe[:, :S, :].astype(x.dtype)
    assert out.shape == (B, S, D)
    assert jnp.allclose(out, ref, atol=1e-6), "mismatch vs reference"

    print("KERNEL_OK")
</pallas_src>

<mosaic_0001>
module attributes {stable_mosaic.version = 11 : i64} {
  func.func @_add_pe_kernel(%arg0: i32, %arg1: i32, %arg2: memref<2x256xf32, #tpu.memory_space<vmem>>, %arg3: memref<1x256xf32, #tpu.memory_space<vmem>>, %arg4: memref<2x256xf32, #tpu.memory_space<vmem>>) attributes {dimension_semantics = [#tpu.dimension_semantics<parallel>, #tpu.dimension_semantics<parallel>], iteration_bounds = array<i64: 1, 1>, scalar_prefetch = 0 : i64, scratch_operands = 0 : i64, tpu.core_type = #tpu.core_type<tc>, window_params = [{transform_indices = @transform_0, window_bounds = array<i64: 2, 256>}, {transform_indices = @transform_1, window_bounds = array<i64: 1, 256>}, {transform_indices = @transform_2, window_bounds = array<i64: 2, 256>}]} {
    %c0 = arith.constant 0 : index
    %c0_0 = arith.constant 0 : index
    %0 = vector.load %arg2[%c0, %c0_0] : memref<2x256xf32, #tpu.memory_space<vmem>>, vector<2x256xf32>
    %c0_1 = arith.constant 0 : index
    %c0_2 = arith.constant 0 : index
    %1 = vector.load %arg3[%c0_1, %c0_2] : memref<1x256xf32, #tpu.memory_space<vmem>>, vector<1x256xf32>
    %2 = vector.broadcast %1 : vector<1x256xf32> to vector<2x256xf32>
    %3 = arith.addf %0, %2 : vector<2x256xf32>
    %c0_3 = arith.constant 0 : index
    %c0_4 = arith.constant 0 : index
    %4 = vector.load %arg4[%c0_3, %c0_4] : memref<2x256xf32, #tpu.memory_space<vmem>>, vector<2x256xf32>
    tpu.vector_store %arg4[%c0_3, %c0_4], %3 {strides = array<i32>} : memref<2x256xf32, #tpu.memory_space<vmem>>, vector<2x256xf32>,
    return
  }
  func.func @transform_0(%arg0: i32, %arg1: i32) -> (i32, i32) {
    %c0_i32 = arith.constant 0 : i32
    return %arg1, %arg0 : i32, i32
  }
  func.func @transform_1(%arg0: i32, %arg1: i32) -> (i32, i32) {
    %c0_i32 = arith.constant 0 : i32
    %c0_i32_0 = arith.constant 0 : i32
    return %c0_i32, %arg0 : i32, i32
  }
  func.func @transform_2(%arg0: i32, %arg1: i32) -> (i32, i32) {
    %c0_i32 = arith.constant 0 : i32
    return %arg1, %arg0 : i32, i32
  }
}

</mosaic_0001>

<llo_original>
// kernel: tpu_custom_call.1
$region0: #{tpu_custom_call.1}
  #allocation0 [shape = 'u32[]', space=smem, size = 0x4, offset = 0x4, fixed_abs, tag = 'smem constant byte address 0x4 - core index']
  #allocation1 [shape = 'u32[144,128]{1,0:T(1,128)}', space=vmem, size = 0x12000, scoped, tag = 'internal scratch']
  %s0 = inlined_call_operand.hbm [shape: f32[2,256], index: 0, kind: input, shape index: {}]
  %s1 = inlined_call_operand.vmem [shape: f32[1,256], index: 1, kind: input, shape index: {}]
  %s2 = inlined_call_operand.hbm [shape: f32[2,256], index: 2, kind: output, shape index: {}]
  %s3 = sld [smem:[#allocation0]]
  $region22: #{tpu_custom_call.1} parent=0
    _
  %s5 = ssub.s32 1, %s3
  %s6 = scalar_select 0, %s5, %s3
  $region1: #{tpu_custom_call.1} parent=0
    #allocation2 [shape = 'u8[2048]{0}', space=vmem, size = 0x800, scoped, tag = 'input window, operand 0, single buffered']
    #allocation3 [shape = 's32[1]{0}', space=sflag, size = 0x4, scoped, tag = 'scoped memory for tpu_custom_call.1']
    #allocation4 [shape = 's32[1]{0}', space=sflag, size = 0x4, scoped, tag = 'scoped memory for tpu_custom_call.1']
    #allocation5 [shape = 'u8[2048]{0}', space=vmem, size = 0x800, scoped, tag = 'output window, operand 0, single buffered']
    %7 = vsyncpa [#allocation3], 0
    %8 = vsyncpa [#allocation4], 0
    // Predicated region
    $region2: #{tpu_custom_call.1} parent=1 // pred_check
      _
    $region3: #{tpu_custom_call.1} parent=1 // pred_check_branch
      %10 = sbr.rel (0) target = $region5
    $region4: #{tpu_custom_call.1} parent=1 // pred_region
      %s12 = ssub.s32 64, 64
      %13 = vsyncadd [#allocation3], %s12
      %s15 = sshll.u32 [#allocation2], 4
      %s16 = int_to_ptr.vmem [resolvable:$true] %s15
      %18 = dma.hbm_to_vmem [thread:$0]  %s0, 64, %s16, [#allocation3]
    $region5: #{tpu_custom_call.1} parent=1 // pred_fallthru
      _
    // Predicated region
    $region6: #{tpu_custom_call.1} parent=1 // pred_check
      _
    $region7: #{tpu_custom_call.1} parent=1 // pred_check_branch
      %20 = sbr.rel (0) target = $region9
    $region8: #{tpu_custom_call.1} parent=1 // pred_region
      _
    $region9: #{tpu_custom_call.1} parent=1 // pred_fallthru
      _
    // Predicated region
    $region10: #{tpu_custom_call.1} parent=1 // pred_check
      _
    $region11: #{tpu_custom_call.1} parent=1 // pred_check_branch
      %22 = sbr.rel (0) target = $region13
    $region12: #{tpu_custom_call.1} parent=1 // pred_region
      %23 = dma.done [#allocation3], 64
    $region13: #{tpu_custom_call.1} parent=1 // pred_fallthru
      _
    %v24 = vld [vmem:[#allocation2] sm:$0xf]
    %v25 = vld [vmem:[%s1] sm:$0x3]
    %v27 = vlaneseq
    %v28 = vshrl.u32 %v27, 7
    %v29 = vsub.s32 0, %v28
    %v30 = vrot.slane %v25, %v29
    %v31 = vlaneseq
    %v32 = vshrl.u32 %v31, 7
    %v33 = vsub.s32 1, %v32
    %v34 = vrot.slane %v25, %v33
    %v35 = vcombine.low %v30, %v34
    %v37 = vunpack.c.l.s4 1983009808
    %v38 = vunpack.c.0.s8 %v37
    %v39 = vlaneseq
    %v40 = vshrl.u32 %v39, 7
    %v41 = vsub.s32 %v38, %v40
    %v42 = vrot.slane %v35, %v41
    %v44 = vadd.f32 %v24, %v42
    %45 = vst [vmem:[#allocation5] sm:$0xf] %v44
    // Predicated region
    $region14: #{tpu_custom_call.1} parent=1 // pred_check
      _
    $region15: #{tpu_custom_call.1} parent=1 // pred_check_branch
      %47 = sbr.rel (0) target = $region17
    $region16: #{tpu_custom_call.1} parent=1 // pred_region
      %s49 = ssub.s32 64, 64
      %50 = vsyncadd [#allocation4], %s49
      %s52 = sshll.u32 [#allocation5], 4
      %s53 = int_to_ptr.vmem [resolvable:$true] %s52
      %55 = dma.vmem_to_hbm [thread:$0]  %s53, 64, %s2, [#allocation4]
    $region17: #{tpu_custom_call.1} parent=1 // pred_fallthru
      _
    // Predicated region
    $region18: #{tpu_custom_call.1} parent=1 // pred_check
      _
    $region19: #{tpu_custom_call.1} parent=1 // pred_check_branch
      %57 = sbr.rel (0) target = $region21
    $region20: #{tpu_custom_call.1} parent=1 // pred_region
      %58 = dma.done [#allocation4], 64
    $region21: #{tpu_custom_call.1} parent=1 // pred_fallthru
      _
    %59 = vsyncpa [#allocation3], 1
    %60 = vsyncpa [#allocation4], 1

</llo_original>
